<compile_context>
chip_gen: v6e
topology: v6e:2x2x1
jax: 0.10.0
libtpu: 0.0.40
codegen_flags: <defaults>
</compile_context>

<pallas_src>
import functools

import jax
import jax.numpy as jnp
from jax.experimental import pallas as pl
from jax.experimental.pallas import tpu as pltpu

EPS = 1e-5
NEG_SLOPE = 0.01  # torch F.leaky_relu default


# ---------------------------------- kernel -----------------------------------


def conv_block2d_kernel(x_ref, w1_ref, w2_ref, w3_ref, o_ref, *, H, W):
    HW = H * W
    x = x_ref[0]                                        # (C_in, HW) f32

    # Column-position masks for the circular W wrap (computed once, reused).
    col = jax.lax.broadcasted_iota(jnp.int32, (1, HW), 1) % W
    first_col = col == 0
    last_col = col == (W - 1)

    def roll_l(a, s):
        # Circular roll along the lane (flattened H*W) axis, jnp.roll semantics:
        # out[p] = a[(p - s) mod HW].
        s = s % HW
        if s == 0:
            return a
        return pltpu.roll(a, s, axis=1)

    def conv3x3(a, w):
        # a: (C, HW), w: (Cout, 9*C)  ->  (Cout, HW).  No bias: it would be
        # cancelled exactly by the following InstanceNorm mean subtraction.
        # Taps at w+1 / w-1 (circular in W): flat lane roll + per-row wrap fix.
        a_wp = jnp.where(last_col, roll_l(a, W - 1), roll_l(a, -1))      # x(., w+1)
        a_wm = jnp.where(first_col, roll_l(a, -(W - 1)), roll_l(a, 1))   # x(., w-1)
        # Single flat 9-piece concat, ordered (dy, dx, channel) to match the
        # weight layout.  H shift by +-1 is an exact flat roll by +-W.
        taps = [roll_l(t, s)
                for s in (W, 0, -W)           # dy = 0, 1, 2  -> x(h-1), x(h), x(h+1)
                for t in (a_wm, a, a_wp)]     # dx = 0, 1, 2  -> x(w-1), x(w), x(w+1)
        stack9 = jnp.concatenate(taps, axis=0)                           # (9*C, HW)
        return jnp.dot(w, stack9, preferred_element_type=jnp.float32)

    def inorm_lrelu(y):
        # Fused single-pass instance-norm stats + leaky_relu(0.01).
        inv_n = 1.0 / HW
        s = jnp.sum(y, axis=1, keepdims=True)
        s2 = jnp.sum(y * y, axis=1, keepdims=True)
        mean = s * inv_n
        var = s2 * inv_n - mean * mean          # biased variance (torch InstanceNorm)
        y = (y - mean) * jax.lax.rsqrt(var + EPS)
        return jnp.maximum(y, NEG_SLOPE * y)    # valid since 0 < slope < 1

    # stage 1: circular pad -> conv3x3 -> InstanceNorm -> leaky_relu
    y = inorm_lrelu(conv3x3(x, w1_ref[...]))
    # stage 2: circular pad -> conv3x3 -> InstanceNorm -> leaky_relu
    y = inorm_lrelu(conv3x3(y, w2_ref[...]))
    # stage 3: conv1x1 -> InstanceNorm -> leaky_relu
    y = inorm_lrelu(jnp.dot(w3_ref[...], y, preferred_element_type=jnp.float32))

    o_ref[0] = y.astype(o_ref.dtype)


# --------------------------------- wrapper ------------------------------------


def _pad_axis(a, axis, new_size):
    pad = new_size - a.shape[axis]
    if pad == 0:
        return a
    widths = [(0, 0)] * a.ndim
    widths[axis] = (0, pad)
    return jnp.pad(a, widths)


def _merged_conv_weight(w_oihw, batch, cout_p, cin_p):
    """Torch OIHW weight -> (batch*cout_p, KH*KW*batch*cin_p), block-diagonal
    across the batch, K flattened as (dy, dx, image, cin) to match the
    in-kernel tap stack.  batch=1 reduces to the plain per-image layout."""
    wp = _pad_axis(_pad_axis(w_oihw, 0, cout_p), 1, cin_p)   # (cout_p, cin_p, KH, KW)
    kh, kw = wp.shape[2], wp.shape[3]
    eye = jnp.eye(batch, dtype=wp.dtype)
    # M[n, o, y, x, m, c] = wp[o, c, y, x] * eye[n, m]
    m = jnp.einsum("ocyx,nm->noyxmc", wp, eye)
    return m.reshape(batch * cout_p, kh * kw * batch * cin_p)


def _single_tensorcore_chip():
    """True for v5e / v6e (one TensorCore per chip -> merge the batch into a
    single grid step).  v7x / v4 / v5p keep grid=(N,) so "parallel" shards the
    batch across cores."""
    try:
        kind = jax.devices()[0].device_kind.lower()
    except Exception:
        return False
    return any(t in kind for t in
               ("v5e", "v5 lite", "v5lite", "v6e", "v6 lite", "v6lite"))


def conv_block2d(x_nchw, w1, b1, w2, b2, w3, b3, *, images_per_step=None):
    """x_nchw: (N, Cin, H, W). Weights in torch OIHW layout. Returns (N, Cout, H, W).

    Biases b1/b2/b3 are accepted for interface parity with the torch module but
    are dropped: bias-before-InstanceNorm2d(affine=False) cancels exactly."""
    del b1, b2, b3
    N, Cin, H, W = x_nchw.shape
    Cout = w1.shape[0]
    HW = H * W

    # Pad channel counts to multiples of 8 so sublane concats/blocks are aligned.
    cin_p = -(-Cin // 8) * 8
    cout_p = -(-Cout // 8) * 8

    # Images processed per grid step: whole batch on single-TC chips (one grid
    # step, block-diagonal weights), one image per step otherwise (2 TC on v7x).
    if images_per_step is None:
        images_per_step = N if _single_tensorcore_chip() else 1
    B = max(1, min(int(images_per_step), N))
    while N % B != 0:
        B -= 1
    G = N // B

    # Input: NCHW -> (G, B*Cin_p, H*W). Pure reshape + zero pad, no transpose.
    x_flat = _pad_axis(x_nchw.reshape(N, Cin, HW), 1, cin_p).reshape(G, B * cin_p, HW)

    w1_k = _merged_conv_weight(w1, B, cout_p, cin_p)     # (B*cout_p, 9*B*cin_p)
    w2_k = _merged_conv_weight(w2, B, cout_p, cout_p)    # (B*cout_p, 9*B*cout_p)
    w3_k = _merged_conv_weight(w3, B, cout_p, cout_p)    # (B*cout_p, B*cout_p)

    kern = functools.partial(conv_block2d_kernel, H=H, W=W)

    out_flat = pl.pallas_call(
        kern,
        out_shape=jax.ShapeDtypeStruct((G, B * cout_p, HW), jnp.float32),
        grid_spec=pltpu.PrefetchScalarGridSpec(
            num_scalar_prefetch=0,
            grid=(G,),
            in_specs=[
                pl.BlockSpec((1, B * cin_p, HW), lambda g: (g, 0, 0)),
                pl.BlockSpec(w1_k.shape, lambda g: (0, 0)),
                pl.BlockSpec(w2_k.shape, lambda g: (0, 0)),
                pl.BlockSpec(w3_k.shape, lambda g: (0, 0)),
            ],
            out_specs=pl.BlockSpec((1, B * cout_p, HW), lambda g: (g, 0, 0)),
        ),
        compiler_params=pltpu.CompilerParams(
            dimension_semantics=("parallel",),
            # Working set is ~100 KiB; state the budget explicitly so the
            # compiler never silently picks a smaller scoped limit.  32 MiB is
            # safe on every chip including v7x (64 MiB physical VMEM).
            vmem_limit_bytes=32 * 1024 * 1024),
    )(x_flat, w1_k, w2_k, w3_k)

    # (G, B*Cout_p, H*W) -> (N, Cout_p, H*W) -> slice -> NCHW (no transpose).
    return out_flat.reshape(N, cout_p, HW)[:, :Cout, :].reshape(N, Cout, H, W)


# ----------------------------- pure-JAX reference ------------------------------


def conv_block2d_ref(x, w1, b1, w2, b2, w3, b3):
    def circ_pad(x):
        x = jnp.concatenate([x[:, :, -1:, :], x, x[:, :, :1, :]], axis=2)
        x = jnp.concatenate([x[:, :, :, -1:], x, x[:, :, :, :1]], axis=3)
        return x

    def inorm(x):
        m = x.mean(axis=(2, 3), keepdims=True)
        v = ((x - m) ** 2).mean(axis=(2, 3), keepdims=True)
        return (x - m) / jnp.sqrt(v + EPS)

    def lrelu(x):
        return jnp.where(x >= 0, x, NEG_SLOPE * x)

    def conv(x, w, b):
        y = jax.lax.conv_general_dilated(
            x, w, window_strides=(1, 1), padding="VALID",
            dimension_numbers=("NCHW", "OIHW", "NCHW"))
        return y + b.reshape(1, -1, 1, 1)

    x = lrelu(inorm(conv(circ_pad(x), w1, b1)))
    x = lrelu(inorm(conv(circ_pad(x), w2, b2)))
    x = lrelu(inorm(conv(x, w3, b3)))
    return x


# ----------------------------------- main --------------------------------------


if __name__ == "__main__":
    N, Cin, Cout, H, W = 2, 4, 8, 16, 16

    key = jax.random.PRNGKey(0)
    kx, k1, k2, k3, k4, k5, k6 = jax.random.split(key, 7)

    x = jax.random.normal(kx, (N, Cin, H, W), jnp.float32)
    # Deterministic synthetic parameters (torch Conv2d layouts: OIHW / (O,)).
    w1 = 0.1 * jax.random.normal(k1, (Cout, Cin, 3, 3), jnp.float32)
    b1 = 0.1 * jax.random.normal(k2, (Cout,), jnp.float32)
    w2 = 0.1 * jax.random.normal(k3, (Cout, Cout, 3, 3), jnp.float32)
    b2 = 0.1 * jax.random.normal(k4, (Cout,), jnp.float32)
    w3 = 0.1 * jax.random.normal(k5, (Cout, Cout, 1, 1), jnp.float32)
    b3 = 0.1 * jax.random.normal(k6, (Cout,), jnp.float32)

    ref = jax.block_until_ready(conv_block2d_ref(x, w1, b1, w2, b2, w3, b3))

    # Exercise the per-image grid path, the merged single-step path, and the
    # auto-detected default (one of the two), so both code paths are verified
    # regardless of which chip this runs on.
    for ips in (1, N, None):
        out = jax.block_until_ready(
            conv_block2d(x, w1, b1, w2, b2, w3, b3, images_per_step=ips))
        assert out.shape == (N, Cout, H, W), (ips, out.shape)
        err = float(jnp.max(jnp.abs(out - ref)))
        assert jnp.allclose(out, ref, atol=1e-4, rtol=1e-4), (ips, err)

    print("KERNEL_OK")
</pallas_src>

<mosaic_0001>
module attributes {stable_mosaic.version = 11 : i64} {
  func.func @conv_block2d_kernel(%arg0: i32, %arg1: memref<1x8x256xf32, #tpu.memory_space<vmem>>, %arg2: memref<8x72xf32, #tpu.memory_space<vmem>>, %arg3: memref<8x72xf32, #tpu.memory_space<vmem>>, %arg4: memref<8x8xf32, #tpu.memory_space<vmem>>, %arg5: memref<1x8x256xf32, #tpu.memory_space<vmem>>) attributes {dimension_semantics = [#tpu.dimension_semantics<parallel>], iteration_bounds = array<i64: 2>, scalar_prefetch = 0 : i64, scratch_operands = 0 : i64, tpu.core_type = #tpu.core_type<tc>, window_params = [{transform_indices = @transform_0, window_bounds = array<i64: 1, 8, 256>}, {pipeline_mode = #tpu.pipeline_mode<synchronous>, transform_indices = @transform_1, window_bounds = array<i64: 8, 72>}, {pipeline_mode = #tpu.pipeline_mode<synchronous>, transform_indices = @transform_2, window_bounds = array<i64: 8, 72>}, {pipeline_mode = #tpu.pipeline_mode<synchronous>, transform_indices = @transform_3, window_bounds = array<i64: 8, 8>}, {transform_indices = @transform_4, window_bounds = array<i64: 1, 8, 256>}]} {
    %c0 = arith.constant 0 : index
    %c0_0 = arith.constant 0 : index
    %c0_1 = arith.constant 0 : index
    %0 = vector.load %arg1[%c0, %c0_0, %c0_1] : memref<1x8x256xf32, #tpu.memory_space<vmem>>, vector<1x8x256xf32>
    %1 = vector.shape_cast %0 : vector<1x8x256xf32> to vector<8x256xf32>
    %2 = tpu.iota {dimensions = array<i32: 1>} : vector<1x256xi32>
    %c16_i32 = arith.constant 16 : i32
    %c0_i32 = arith.constant 0 : i32
    %3 = arith.cmpi eq, %c16_i32, %c0_i32 : i32
    %c1_i32 = arith.constant 1 : i32
    %4 = arith.select %3, %c1_i32, %c16_i32 : i32
    %5 = vector.broadcast %4 : i32 to vector<1x256xi32>
    %6 = arith.remsi %2, %5 : vector<1x256xi32>
    %c0_i32_2 = arith.constant 0 : i32
    %7 = vector.broadcast %c0_i32_2 : i32 to vector<1x256xi32>
    %8 = arith.cmpi ne, %6, %7 : vector<1x256xi32>
    %c0_i32_3 = arith.constant 0 : i32
    %9 = vector.broadcast %c0_i32_3 : i32 to vector<1x256xi32>
    %10 = arith.cmpi slt, %6, %9 : vector<1x256xi32>
    %c0_i32_4 = arith.constant 0 : i32
    %11 = arith.cmpi slt, %4, %c0_i32_4 : i32
    %12 = vector.broadcast %11 : i1 to vector<1x256xi1>
    %13 = vector.broadcast %12 : vector<1x256xi1> to vector<1x256xi1>
    %14 = arith.xori %10, %13 : vector<1x256xi1>
    %15 = arith.andi %14, %8 : vector<1x256xi1>
    %16 = vector.broadcast %4 : i32 to vector<1x256xi32>
    %17 = arith.addi %6, %16 : vector<1x256xi32>
    %18 = arith.select %15, %17, %6 : vector<1x256xi1>, vector<1x256xi32>
    %c0_i32_5 = arith.constant 0 : i32
    %19 = vector.broadcast %c0_i32_5 : i32 to vector<1x256xi32>
    %20 = arith.cmpi eq, %18, %19 : vector<1x256xi32>
    %c15_i32 = arith.constant 15 : i32
    %21 = vector.broadcast %c15_i32 : i32 to vector<1x256xi32>
    %22 = arith.cmpi eq, %18, %21 : vector<1x256xi32>
    %c0_6 = arith.constant 0 : index
    %c0_7 = arith.constant 0 : index
    %23 = vector.load %arg2[%c0_6, %c0_7] : memref<8x72xf32, #tpu.memory_space<vmem>>, vector<8x72xf32>
    %c15_i32_8 = arith.constant 15 : i32
    %24 = tpu.dynamic_rotate %1 by %c15_i32_8 dim 1 : vector<8x256xf32>, i32 -> vector<8x256xf32>
    %c255_i32 = arith.constant 255 : i32
    %25 = tpu.dynamic_rotate %1 by %c255_i32 dim 1 : vector<8x256xf32>, i32 -> vector<8x256xf32>
    %26 = vector.shape_cast %22 : vector<1x256xi1> to vector<1x256xi1>
    %27 = vector.broadcast %26 : vector<1x256xi1> to vector<8x256xi1>
    %28 = arith.select %27, %24, %25 : vector<8x256xi1>, vector<8x256xf32>
    %c241_i32 = arith.constant 241 : i32
    %29 = tpu.dynamic_rotate %1 by %c241_i32 dim 1 : vector<8x256xf32>, i32 -> vector<8x256xf32>
    %c1_i32_9 = arith.constant 1 : i32
    %30 = tpu.dynamic_rotate %1 by %c1_i32_9 dim 1 : vector<8x256xf32>, i32 -> vector<8x256xf32>
    %31 = vector.shape_cast %20 : vector<1x256xi1> to vector<1x256xi1>
    %32 = vector.broadcast %31 : vector<1x256xi1> to vector<8x256xi1>
    %33 = arith.select %32, %29, %30 : vector<8x256xi1>, vector<8x256xf32>
    %c16_i32_10 = arith.constant 16 : i32
    %34 = tpu.dynamic_rotate %33 by %c16_i32_10 dim 1 : vector<8x256xf32>, i32 -> vector<8x256xf32>
    %c16_i32_11 = arith.constant 16 : i32
    %35 = tpu.dynamic_rotate %1 by %c16_i32_11 dim 1 : vector<8x256xf32>, i32 -> vector<8x256xf32>
    %c16_i32_12 = arith.constant 16 : i32
    %36 = tpu.dynamic_rotate %28 by %c16_i32_12 dim 1 : vector<8x256xf32>, i32 -> vector<8x256xf32>
    %c240_i32 = arith.constant 240 : i32
    %37 = tpu.dynamic_rotate %33 by %c240_i32 dim 1 : vector<8x256xf32>, i32 -> vector<8x256xf32>
    %c240_i32_13 = arith.constant 240 : i32
    %38 = tpu.dynamic_rotate %1 by %c240_i32_13 dim 1 : vector<8x256xf32>, i32 -> vector<8x256xf32>
    %c240_i32_14 = arith.constant 240 : i32
    %39 = tpu.dynamic_rotate %28 by %c240_i32_14 dim 1 : vector<8x256xf32>, i32 -> vector<8x256xf32>
    %40 = tpu.concatenate %34, %35, %36, %33, %1, %28, %37, %38, %39 in 0 : vector<8x256xf32>, vector<8x256xf32>, vector<8x256xf32>, vector<8x256xf32>, vector<8x256xf32>, vector<8x256xf32>, vector<8x256xf32>, vector<8x256xf32>, vector<8x256xf32> -> vector<72x256xf32>
    %cst = arith.constant dense<0.000000e+00> : vector<8x256xf32>
    %41 = tpu.matmul %23, %40, %cst {dimension_numbers = #tpu.dot_dimension_numbers<[1], [0], [0], [1], [0, 0, 1, 1], [], []>} : vector<8x72xf32>, vector<72x256xf32>, vector<8x256xf32> -> vector<8x256xf32>
    %cst_15 = arith.constant dense<0.000000e+00> : vector<8xf32>
    %42 = vector.multi_reduction <add>, %41, %cst_15 [1] : vector<8x256xf32> to vector<8xf32>
    %43 = vector.shape_cast %42 : vector<8xf32> to vector<8x1xf32>
    %44 = arith.mulf %41, %41 : vector<8x256xf32>
    %cst_16 = arith.constant dense<0.000000e+00> : vector<8xf32>
    %45 = vector.multi_reduction <add>, %44, %cst_16 [1] : vector<8x256xf32> to vector<8xf32>
    %46 = vector.shape_cast %45 : vector<8xf32> to vector<8x1xf32>
    %cst_17 = arith.constant 3.906250e-03 : f32
    %47 = vector.broadcast %cst_17 : f32 to vector<8x1xf32>
    %48 = arith.mulf %43, %47 : vector<8x1xf32>
    %cst_18 = arith.constant 3.906250e-03 : f32
    %49 = vector.broadcast %cst_18 : f32 to vector<8x1xf32>
    %50 = arith.mulf %46, %49 : vector<8x1xf32>
    %51 = arith.mulf %48, %48 : vector<8x1xf32>
    %52 = arith.subf %50, %51 : vector<8x1xf32>
    %53 = vector.broadcast %48 : vector<8x1xf32> to vector<8x256xf32>
    %54 = arith.subf %41, %53 : vector<8x256xf32>
    %cst_19 = arith.constant 9.99999974E-6 : f32
    %55 = vector.broadcast %cst_19 : f32 to vector<8x1xf32>
    %56 = arith.addf %52, %55 : vector<8x1xf32>
    %57 = math.rsqrt %56 : vector<8x1xf32>
    %58 = vector.broadcast %57 : vector<8x1xf32> to vector<8x256xf32>
    %59 = arith.mulf %54, %58 : vector<8x256xf32>
    %cst_20 = arith.constant 0.00999999977 : f32
    %60 = vector.broadcast %cst_20 : f32 to vector<8x256xf32>
    %61 = arith.mulf %60, %59 : vector<8x256xf32>
    %62 = arith.maximumf %59, %61 : vector<8x256xf32>
    %c0_21 = arith.constant 0 : index
    %c0_22 = arith.constant 0 : index
    %63 = vector.load %arg3[%c0_21, %c0_22] : memref<8x72xf32, #tpu.memory_space<vmem>>, vector<8x72xf32>
    %c15_i32_23 = arith.constant 15 : i32
    %64 = tpu.dynamic_rotate %62 by %c15_i32_23 dim 1 : vector<8x256xf32>, i32 -> vector<8x256xf32>
    %c255_i32_24 = arith.constant 255 : i32
    %65 = tpu.dynamic_rotate %62 by %c255_i32_24 dim 1 : vector<8x256xf32>, i32 -> vector<8x256xf32>
    %66 = vector.shape_cast %22 : vector<1x256xi1> to vector<1x256xi1>
    %67 = vector.broadcast %66 : vector<1x256xi1> to vector<8x256xi1>
    %68 = arith.select %67, %64, %65 : vector<8x256xi1>, vector<8x256xf32>
    %c241_i32_25 = arith.constant 241 : i32
    %69 = tpu.dynamic_rotate %62 by %c241_i32_25 dim 1 : vector<8x256xf32>, i32 -> vector<8x256xf32>
    %c1_i32_26 = arith.constant 1 : i32
    %70 = tpu.dynamic_rotate %62 by %c1_i32_26 dim 1 : vector<8x256xf32>, i32 -> vector<8x256xf32>
    %71 = vector.shape_cast %20 : vector<1x256xi1> to vector<1x256xi1>
    %72 = vector.broadcast %71 : vector<1x256xi1> to vector<8x256xi1>
    %73 = arith.select %72, %69, %70 : vector<8x256xi1>, vector<8x256xf32>
    %c16_i32_27 = arith.constant 16 : i32
    %74 = tpu.dynamic_rotate %73 by %c16_i32_27 dim 1 : vector<8x256xf32>, i32 -> vector<8x256xf32>
    %c16_i32_28 = arith.constant 16 : i32
    %75 = tpu.dynamic_rotate %62 by %c16_i32_28 dim 1 : vector<8x256xf32>, i32 -> vector<8x256xf32>
    %c16_i32_29 = arith.constant 16 : i32
    %76 = tpu.dynamic_rotate %68 by %c16_i32_29 dim 1 : vector<8x256xf32>, i32 -> vector<8x256xf32>
    %c240_i32_30 = arith.constant 240 : i32
    %77 = tpu.dynamic_rotate %73 by %c240_i32_30 dim 1 : vector<8x256xf32>, i32 -> vector<8x256xf32>
    %c240_i32_31 = arith.constant 240 : i32
    %78 = tpu.dynamic_rotate %62 by %c240_i32_31 dim 1 : vector<8x256xf32>, i32 -> vector<8x256xf32>
    %c240_i32_32 = arith.constant 240 : i32
    %79 = tpu.dynamic_rotate %68 by %c240_i32_32 dim 1 : vector<8x256xf32>, i32 -> vector<8x256xf32>
    %80 = tpu.concatenate %74, %75, %76, %73, %62, %68, %77, %78, %79 in 0 : vector<8x256xf32>, vector<8x256xf32>, vector<8x256xf32>, vector<8x256xf32>, vector<8x256xf32>, vector<8x256xf32>, vector<8x256xf32>, vector<8x256xf32>, vector<8x256xf32> -> vector<72x256xf32>
    %cst_33 = arith.constant dense<0.000000e+00> : vector<8x256xf32>
    %81 = tpu.matmul %63, %80, %cst_33 {dimension_numbers = #tpu.dot_dimension_numbers<[1], [0], [0], [1], [0, 0, 1, 1], [], []>} : vector<8x72xf32>, vector<72x256xf32>, vector<8x256xf32> -> vector<8x256xf32>
    %cst_34 = arith.constant dense<0.000000e+00> : vector<8xf32>
    %82 = vector.multi_reduction <add>, %81, %cst_34 [1] : vector<8x256xf32> to vector<8xf32>
    %83 = vector.shape_cast %82 : vector<8xf32> to vector<8x1xf32>
    %84 = arith.mulf %81, %81 : vector<8x256xf32>
    %cst_35 = arith.constant dense<0.000000e+00> : vector<8xf32>
    %85 = vector.multi_reduction <add>, %84, %cst_35 [1] : vector<8x256xf32> to vector<8xf32>
    %86 = vector.shape_cast %85 : vector<8xf32> to vector<8x1xf32>
    %cst_36 = arith.constant 3.906250e-03 : f32
    %87 = vector.broadcast %cst_36 : f32 to vector<8x1xf32>
    %88 = arith.mulf %83, %87 : vector<8x1xf32>
    %cst_37 = arith.constant 3.906250e-03 : f32
    %89 = vector.broadcast %cst_37 : f32 to vector<8x1xf32>
    %90 = arith.mulf %86, %89 : vector<8x1xf32>
    %91 = arith.mulf %88, %88 : vector<8x1xf32>
    %92 = arith.subf %90, %91 : vector<8x1xf32>
    %93 = vector.broadcast %88 : vector<8x1xf32> to vector<8x256xf32>
    %94 = arith.subf %81, %93 : vector<8x256xf32>
    %cst_38 = arith.constant 9.99999974E-6 : f32
    %95 = vector.broadcast %cst_38 : f32 to vector<8x1xf32>
    %96 = arith.addf %92, %95 : vector<8x1xf32>
    %97 = math.rsqrt %96 : vector<8x1xf32>
    %98 = vector.broadcast %97 : vector<8x1xf32> to vector<8x256xf32>
    %99 = arith.mulf %94, %98 : vector<8x256xf32>
    %cst_39 = arith.constant 0.00999999977 : f32
    %100 = vector.broadcast %cst_39 : f32 to vector<8x256xf32>
    %101 = arith.mulf %100, %99 : vector<8x256xf32>
    %102 = arith.maximumf %99, %101 : vector<8x256xf32>
    %c0_40 = arith.constant 0 : index
    %c0_41 = arith.constant 0 : index
    %103 = vector.load %arg4[%c0_40, %c0_41] : memref<8x8xf32, #tpu.memory_space<vmem>>, vector<8x8xf32>
    %cst_42 = arith.constant dense<0.000000e+00> : vector<8x256xf32>
    %104 = tpu.matmul %103, %102, %cst_42 {dimension_numbers = #tpu.dot_dimension_numbers<[1], [0], [0], [1], [0, 0, 1, 1], [], []>} : vector<8x8xf32>, vector<8x256xf32>, vector<8x256xf32> -> vector<8x256xf32>
    %cst_43 = arith.constant dense<0.000000e+00> : vector<8xf32>
    %105 = vector.multi_reduction <add>, %104, %cst_43 [1] : vector<8x256xf32> to vector<8xf32>
    %106 = vector.shape_cast %105 : vector<8xf32> to vector<8x1xf32>
    %107 = arith.mulf %104, %104 : vector<8x256xf32>
    %cst_44 = arith.constant dense<0.000000e+00> : vector<8xf32>
    %108 = vector.multi_reduction <add>, %107, %cst_44 [1] : vector<8x256xf32> to vector<8xf32>
    %109 = vector.shape_cast %108 : vector<8xf32> to vector<8x1xf32>
    %cst_45 = arith.constant 3.906250e-03 : f32
    %110 = vector.broadcast %cst_45 : f32 to vector<8x1xf32>
    %111 = arith.mulf %106, %110 : vector<8x1xf32>
    %cst_46 = arith.constant 3.906250e-03 : f32
    %112 = vector.broadcast %cst_46 : f32 to vector<8x1xf32>
    %113 = arith.mulf %109, %112 : vector<8x1xf32>
    %114 = arith.mulf %111, %111 : vector<8x1xf32>
    %115 = arith.subf %113, %114 : vector<8x1xf32>
    %116 = vector.broadcast %111 : vector<8x1xf32> to vector<8x256xf32>
    %117 = arith.subf %104, %116 : vector<8x256xf32>
    %cst_47 = arith.constant 9.99999974E-6 : f32
    %118 = vector.broadcast %cst_47 : f32 to vector<8x1xf32>
    %119 = arith.addf %115, %118 : vector<8x1xf32>
    %120 = math.rsqrt %119 : vector<8x1xf32>
    %121 = vector.broadcast %120 : vector<8x1xf32> to vector<8x256xf32>
    %122 = arith.mulf %117, %121 : vector<8x256xf32>
    %cst_48 = arith.constant 0.00999999977 : f32
    %123 = vector.broadcast %cst_48 : f32 to vector<8x256xf32>
    %124 = arith.mulf %123, %122 : vector<8x256xf32>
    %125 = arith.maximumf %122, %124 : vector<8x256xf32>
    %c0_49 = arith.constant 0 : index
    %c0_50 = arith.constant 0 : index
    %c0_51 = arith.constant 0 : index
    %126 = vector.load %arg5[%c0_49, %c0_50, %c0_51] : memref<1x8x256xf32, #tpu.memory_space<vmem>>, vector<1x8x256xf32>
    %127 = vector.shape_cast %126 : vector<1x8x256xf32> to vector<8x256xf32>
    %128 = vector.shape_cast %125 : vector<8x256xf32> to vector<1x8x256xf32>
    tpu.vector_store %arg5[%c0_49, %c0_50, %c0_51], %128 {strides = array<i32>} : memref<1x8x256xf32, #tpu.memory_space<vmem>>, vector<1x8x256xf32>,
    return
  }
  func.func @transform_0(%arg0: i32) -> (i32, i32, i32) {
    %c0_i32 = arith.constant 0 : i32
    %c0_i32_0 = arith.constant 0 : i32
    %c0_i32_1 = arith.constant 0 : i32
    return %arg0, %c0_i32, %c0_i32_0 : i32, i32, i32
  }
  func.func @transform_1(%arg0: i32) -> (i32, i32) {
    %c0_i32 = arith.constant 0 : i32
    %c0_i32_0 = arith.constant 0 : i32
    %c0_i32_1 = arith.constant 0 : i32
    return %c0_i32, %c0_i32_0 : i32, i32
  }
  func.func @transform_2(%arg0: i32) -> (i32, i32) {
    %c0_i32 = arith.constant 0 : i32
    %c0_i32_0 = arith.constant 0 : i32
    %c0_i32_1 = arith.constant 0 : i32
    return %c0_i32, %c0_i32_0 : i32, i32
  }
  func.func @transform_3(%arg0: i32) -> (i32, i32) {
    %c0_i32 = arith.constant 0 : i32
    %c0_i32_0 = arith.constant 0 : i32
    %c0_i32_1 = arith.constant 0 : i32
    return %c0_i32, %c0_i32_0 : i32, i32
  }
  func.func @transform_4(%arg0: i32) -> (i32, i32, i32) {
    %c0_i32 = arith.constant 0 : i32
    %c0_i32_0 = arith.constant 0 : i32
    %c0_i32_1 = arith.constant 0 : i32
    return %arg0, %c0_i32, %c0_i32_0 : i32, i32, i32
  }
}

</mosaic_0001>

<llo_original>
// kernel: tpu_custom_call.1
$region0: #{tpu_custom_call.1}
  #allocation0 [shape = 'u32[]', space=smem, size = 0x4, offset = 0x4, fixed_abs, tag = 'smem constant byte address 0x4 - core index']
  #allocation1 [shape = 'u32[144,128]{1,0:T(1,128)}', space=vmem, size = 0x12000, scoped, tag = 'internal scratch']
  %s0 = inlined_call_operand.hbm [shape: f32[2,8,256], index: 0, kind: input, shape index: {}]
  %s1 = inlined_call_operand.hbm [shape: f32[8,72], index: 1, kind: input, shape index: {}]
  %s2 = inlined_call_operand.hbm [shape: f32[8,72], index: 2, kind: input, shape index: {}]
  %s3 = inlined_call_operand.hbm [shape: f32[8,8], index: 3, kind: input, shape index: {}]
  %s4 = inlined_call_operand.hbm [shape: f32[2,8,256], index: 4, kind: output, shape index: {}]
  %s5 = sld [smem:[#allocation0]]
  $region65: #{tpu_custom_call.1} parent=0
    _
  %s7 = ssub.s32 1, %s5
  %s8 = scalar_select 0, %s7, %s5
  $region1: #{tpu_custom_call.1} parent=0
    #allocation2 [shape = 'u8[16384]{0}', space=vmem, size = 0x4000, scoped, tag = 'input window, operand 0']
    #allocation3 [shape = 's32[2]{0}', space=sflag, size = 0x8, scoped, tag = 'scoped memory for tpu_custom_call.1']
    #allocation4 [shape = 's32[2]{0}', space=sflag, size = 0x8, scoped, tag = 'scoped memory for tpu_custom_call.1']
    #allocation5 [shape = 'u8[4096]{0}', space=vmem, size = 0x1000, scoped, tag = 'input window, operand 1, single buffered']
    #allocation6 [shape = 's32[1]{0}', space=sflag, size = 0x4, scoped, tag = 'scoped memory for tpu_custom_call.1']
    #allocation7 [shape = 'u8[4096]{0}', space=vmem, size = 0x1000, scoped, tag = 'input window, operand 2, single buffered']
    #allocation8 [shape = 'u8[4096]{0}', space=vmem, size = 0x1000, scoped, tag = 'input window, operand 3, single buffered']
    #allocation9 [shape = 's32[1]{0}', space=sflag, size = 0x4, scoped, tag = 'scoped memory for tpu_custom_call.1']
    #allocation10 [shape = 'u8[16384]{0}', space=vmem, size = 0x4000, scoped, tag = 'output window, operand 0']
    %9 = vsyncpa [#allocation3], 0
    %s10 = scalar_lea.sflag [#allocation3], 1
    %11 = vsyncpa %s10, 0
    %12 = vsyncpa [#allocation6], 0
    %13 = vsyncpa [#allocation9], 0
    %14 = vsyncpa [#allocation4], 0
    %s15 = scalar_lea.sflag [#allocation4], 1
    %16 = vsyncpa %s15, 0
    loop: start=0, step=1, limit=4
    $region2: #{tpu_custom_call.1} parent=1 // loop_pre_header
      _
    $region3: #{tpu_custom_call.1} parent=1 // loop_header
      %s18 = sphi 0, %s22
      %p19 = scmp.ge.s32.totalorder %s18, 4
      %s28 = sphi 0, %s30
      %s31 = sphi 0, %s28
      %s32 = sphi 0, %s31
      %s48 = sphi 0, %s32
      %s52 = sphi 0, %s52
      %s54 = sphi 0, %s52
      %s55 = sphi 0, %s54
      %s69 = sphi 0, %s55
      %s73 = sphi 0, %s73
      %s75 = sphi 0, %s73
      %s76 = sphi 0, %s75
      %s90 = sphi 0, %s76
      %s94 = sphi 0, %s94
      %s96 = sphi 0, %s94
      %s97 = sphi 0, %s96
      %s111 = sphi 0, %s97
      %s117 = sphi 0, %s119
      %s120 = sphi 0, %s117
      %s121 = sphi 0, %s120
      %s137 = sphi 0, %s121
    $region4: #{tpu_custom_call.1} parent=1 // loop_header_branch
      %21 = sbr.rel (%p19) target = $region8
    $region5: #{tpu_custom_call.1} parent=1 // loop_body
      %s23 = ssub.s32 %s18, 1
      %s24 = ssub.s32 %s18, 2
      %s25 = sadd.s32 %s18, 1
      %s26 = ssub.s32 %s18, %s25
      %p27 = scmp.eq.s32.totalorder %s26, 0
      %s29 = sadd.s32 %s28, 1
      %s30 = scalar_select %p27, %s28, %s29
      %p33 = pneg %p27
      %p34 = scmp.eq.s32.totalorder %s18, 1
      %p35 = por %p33, %p34
      %p36 = scmp.ne.s32.totalorder %s28, %s31
      %p37 = scmp.eq.s32.totalorder %s18, 0
      %p38 = por %p36, %p37
      %p39 = scmp.ne.s32.totalorder %s28, %s31
      %p40 = scmp.eq.s32.totalorder %s23, 1
      %p41 = por %p39, %p40
      %p42 = scmp.ne.s32.totalorder %s31, %s32
      %p43 = scmp.eq.s32.totalorder %s23, 0
      %p44 = por %p42, %p43
      %p45 = scmp.ne.s32.totalorder %s31, %s32
      %p46 = scmp.eq.s32.totalorder %s24, 1
      %p47 = por %p45, %p46
      %p49 = scmp.ne.s32.totalorder %s32, %s48
      %p50 = scmp.eq.s32.totalorder %s24, 0
      %p51 = por %p49, %p50
      %s53 = sadd.s32 %s52, 1
      %p56 = scmp.eq.s32.totalorder %s18, 1
      %p57 = scmp.ne.s32.totalorder %s52, %s54
      %p58 = scmp.eq.s32.totalorder %s18, 0
      %p59 = por %p57, %p58
      %p60 = scmp.ne.s32.totalorder %s52, %s54
      %p61 = scmp.eq.s32.totalorder %s23, 1
      %p62 = por %p60, %p61
      %p63 = scmp.ne.s32.totalorder %s54, %s55
      %p64 = scmp.eq.s32.totalorder %s23, 0
      %p65 = por %p63, %p64
      %p66 = scmp.ne.s32.totalorder %s54, %s55
      %p67 = scmp.eq.s32.totalorder %s24, 1
      %p68 = por %p66, %p67
      %p70 = scmp.ne.s32.totalorder %s55, %s69
      %p71 = scmp.eq.s32.totalorder %s24, 0
      %p72 = por %p70, %p71
      %s74 = sadd.s32 %s73, 1
      %p77 = scmp.eq.s32.totalorder %s18, 1
      %p78 = scmp.ne.s32.totalorder %s73, %s75
      %p79 = scmp.eq.s32.totalorder %s18, 0
      %p80 = por %p78, %p79
      %p81 = scmp.ne.s32.totalorder %s73, %s75
      %p82 = scmp.eq.s32.totalorder %s23, 1
      %p83 = por %p81, %p82
      %p84 = scmp.ne.s32.totalorder %s75, %s76
      %p85 = scmp.eq.s32.totalorder %s23, 0
      %p86 = por %p84, %p85
      %p87 = scmp.ne.s32.totalorder %s75, %s76
      %p88 = scmp.eq.s32.totalorder %s24, 1
      %p89 = por %p87, %p88
      %p91 = scmp.ne.s32.totalorder %s76, %s90
      %p92 = scmp.eq.s32.totalorder %s24, 0
      %p93 = por %p91, %p92
      %s95 = sadd.s32 %s94, 1
      %p98 = scmp.eq.s32.totalorder %s18, 1
      %p99 = scmp.ne.s32.totalorder %s94, %s96
      %p100 = scmp.eq.s32.totalorder %s18, 0
      %p101 = por %p99, %p100
      %p102 = scmp.ne.s32.totalorder %s94, %s96
      %p103 = scmp.eq.s32.totalorder %s23, 1
      %p104 = por %p102, %p103
      %p105 = scmp.ne.s32.totalorder %s96, %s97
      %p106 = scmp.eq.s32.totalorder %s23, 0
      %p107 = por %p105, %p106
      %p108 = scmp.ne.s32.totalorder %s96, %s97
      %p109 = scmp.eq.s32.totalorder %s24, 1
      %p110 = por %p108, %p109
      %p112 = scmp.ne.s32.totalorder %s97, %s111
      %p113 = scmp.eq.s32.totalorder %s24, 0
      %p114 = por %p112, %p113
      %s115 = ssub.s32 %s18, %s25
      %p116 = scmp.eq.s32.totalorder %s115, 0
      %s118 = sadd.s32 %s117, 1
      %s119 = scalar_select %p116, %s117, %s118
      %p122 = pneg %p116
      %p123 = scmp.eq.s32.totalorder %s18, 1
      %p124 = por %p122, %p123
      %p125 = scmp.ne.s32.totalorder %s117, %s120
      %p126 = scmp.eq.s32.totalorder %s18, 0
      %p127 = por %p125, %p126
      %p128 = scmp.ne.s32.totalorder %s117, %s120
      %p129 = scmp.eq.s32.totalorder %s23, 1
      %p130 = por %p128, %p129
      %p131 = scmp.ne.s32.totalorder %s120, %s121
      %p132 = scmp.eq.s32.totalorder %s23, 0
      %p133 = por %p131, %p132
      %p134 = scmp.ne.s32.totalorder %s120, %s121
      %p135 = scmp.eq.s32.totalorder %s24, 1
      %p136 = por %p134, %p135
      %p138 = scmp.ne.s32.totalorder %s121, %s137
      %p139 = scmp.eq.s32.totalorder %s24, 0
      %p140 = por %p138, %p139
      %p141 = scmp.le.s32.totalorder 1, %s18
      %p142 = scmp.lt.s32.totalorder %s18, 3
      %p143 = pnand %p141, %p142
      %p144 = pneg %p143
      // Predicated region
      $region9: #{tpu_custom_call.1} parent=5 // pred_check
        _
      $region10: #{tpu_custom_call.1} parent=5 // pred_check_branch
        %146 = sbr.rel (%p143) target = $region12
      $region11: #{tpu_custom_call.1} parent=5 // pred_region
        %s147 = ssub.s32 %s18, 1
        // Predicated region
        $region13: #{tpu_custom_call.1} parent=11 // pred_check
          %p148 = pneg %p65
        $region14: #{tpu_custom_call.1} parent=11 // pred_check_branch
          %150 = sbr.rel (%p148) target = $region16
        $region15: #{tpu_custom_call.1} parent=11 // pred_region
          %s152 = ssub.s32 128, 128
          %153 = vsyncadd [#allocation6], %s152
          %s155 = sshll.u32 [#allocation5], 4
          %s156 = int_to_ptr.vmem [resolvable:$true] %s155
          %158 = dma.hbm_to_vmem [thread:$0]  %s1, 128, %s156, [#allocation6]
        $region16: #{tpu_custom_call.1} parent=11 // pred_fallthru
          _
        // Predicated region
        $region17: #{tpu_custom_call.1} parent=11 // pred_check
          %p159 = pneg %p86
        $region18: #{tpu_custom_call.1} parent=11 // pred_check_branch
          %161 = sbr.rel (%p159) target = $region20
        $region19: #{tpu_custom_call.1} parent=11 // pred_region
          %s163 = ssub.s32 128, 128
          %164 = vsyncadd [#allocation6], %s163
          %s166 = sshll.u32 [#allocation7], 4
          %s167 = int_to_ptr.vmem [resolvable:$true] %s166
          %169 = dma.hbm_to_vmem [thread:$0]  %s2, 128, %s167, [#allocation6]
        $region20: #{tpu_custom_call.1} parent=11 // pred_fallthru
          _
        // Predicated region
        $region21: #{tpu_custom_call.1} parent=11 // pred_check
          %p170 = pneg %p107
        $region22: #{tpu_custom_call.1} parent=11 // pred_check_branch
          %172 = sbr.rel (%p170) target = $region24
        $region23: #{tpu_custom_call.1} parent=11 // pred_region
          %s174 = ssub.s32 128, 128
          %175 = vsyncadd [#allocation9], %s174
          %s177 = sshll.u32 [#allocation8], 4
          %s178 = int_to_ptr.vmem [resolvable:$true] %s177
          %180 = dma.hbm_to_vmem [thread:$0]  %s3, 128, %s178, [#allocation9]
        $region24: #{tpu_custom_call.1} parent=11 // pred_fallthru
          _
      $region12: #{tpu_custom_call.1} parent=5 // pred_fallthru
        _
      %p181 = scmp.lt.s32.totalorder %s18, 2
      // Predicated region
      $region25: #{tpu_custom_call.1} parent=5 // pred_check
        %p182 = pneg %p181
      $region26: #{tpu_custom_call.1} parent=5 // pred_check_branch
        %184 = sbr.rel (%p182) target = $region28
      $region27: #{tpu_custom_call.1} parent=5 // pred_region
        // Predicated region
        $region29: #{tpu_custom_call.1} parent=27 // pred_check
          %p185 = pneg %p38
        $region30: #{tpu_custom_call.1} parent=27 // pred_check_branch
          %187 = sbr.rel (%p185) target = $region32
        $region31: #{tpu_custom_call.1} parent=27 // pred_region
          %s188 = sand.u32 %s28, 1
          %s189 = scalar_lea.sflag [#allocation3], %s188
          %s190 = sand.u32 %s28, 1
          %s191 = smul.addr %s190, 16
          %s192 = scalar_lea.vmem [#allocation2], %s191
          %s194 = ssub.s32 256, 256
          %195 = vsyncadd %s189, %s194
          %s196 = smul.addr %s18, 2
          %s197 = smul.addr %s196, 128
          %s198 = scalar_lea.hbm %s0, %s197
          %s200 = sshll.u32 %s192, 4
          %s201 = int_to_ptr.vmem [resolvable:$true] %s200
          %203 = dma.hbm_to_vmem [thread:$0]  %s198, 256, %s201, %s189
        $region32: #{tpu_custom_call.1} parent=27 // pred_fallthru
          _
      $region28: #{tpu_custom_call.1} parent=5 // pred_fallthru
        _
      %p204 = scmp.le.s32.totalorder 1, %s18
      %p205 = scmp.lt.s32.totalorder %s18, 3
      %p206 = pnand %p204, %p205
      %p207 = pneg %p206
      // Predicated region
      $region33: #{tpu_custom_call.1} parent=5 // pred_check
        _
      $region34: #{tpu_custom_call.1} parent=5 // pred_check_branch
        %209 = sbr.rel (%p206) target = $region36
      $region35: #{tpu_custom_call.1} parent=5 // pred_region
        %s210 = ssub.s32 %s18, 1
        %s211 = sand.u32 %s31, 1
        %s212 = scalar_lea.sflag [#allocation3], %s211
        %s213 = sand.u32 %s31, 1
        %s214 = smul.addr %s213, 16
        %s215 = scalar_lea.vmem [#allocation2], %s214
        // Predicated region
        $region37: #{tpu_custom_call.1} parent=35 // pred_check
          %p216 = pneg %p44
        $region38: #{tpu_custom_call.1} parent=35 // pred_check_branch
          %218 = sbr.rel (%p216) target = $region40
        $region39: #{tpu_custom_call.1} parent=35 // pred_region
          %219 = dma.done %s212, 256
        $region40: #{tpu_custom_call.1} parent=35 // pred_fallthru
          _
        // Predicated region
        $region41: #{tpu_custom_call.1} parent=35 // pred_check
          %p220 = pneg %p65
        $region42: #{tpu_custom_call.1} parent=35 // pred_check_branch
          %222 = sbr.rel (%p220) target = $region44
        $region43: #{tpu_custom_call.1} parent=35 // pred_region
          %223 = dma.done [#allocation6], 128
        $region44: #{tpu_custom_call.1} parent=35 // pred_fallthru
          _
        // Predicated region
        $region45: #{tpu_custom_call.1} parent=35 // pred_check
          %p224 = pneg %p86
        $region46: #{tpu_custom_call.1} parent=35 // pred_check_branch
          %226 = sbr.rel (%p224) target = $region48
        $region47: #{tpu_custom_call.1} parent=35 // pred_region
          %227 = dma.done [#allocation6], 128
        $region48: #{tpu_custom_call.1} parent=35 // pred_fallthru
          _
        // Predicated region
        $region49: #{tpu_custom_call.1} parent=35 // pred_check
          %p228 = pneg %p107
        $region50: #{tpu_custom_call.1} parent=35 // pred_check_branch
          %230 = sbr.rel (%p228) target = $region52
        $region51: #{tpu_custom_call.1} parent=35 // pred_region
          %231 = dma.done [#allocation9], 128
        $region52: #{tpu_custom_call.1} parent=35 // pred_fallthru
          _
        %s232 = sand.u32 %s31, 1
        %s233 = scalar_lea.sflag [#allocation3], %s232
        %s234 = sand.u32 %s31, 1
        %s235 = smul.addr %s234, 16
        %s236 = scalar_lea.vmem [#allocation2], %s235
        %p237 = pneg %p44
        %p238 = pneg %p41
        %p239 = pneg %p65
        %p240 = pneg %p62
        %p241 = pneg %p86
        %p242 = pneg %p83
        %p243 = pneg %p107
        %p244 = pneg %p104
        %p245 = pneg %p133
        %p246 = pneg %p130
        %s247 = sand.u32 %s120, 1
        %s248 = scalar_lea.sflag [#allocation4], %s247
        %s249 = sand.u32 %s120, 1
        %s250 = smul.addr %s249, 16
        %s251 = scalar_lea.vmem [#allocation10], %s250
        %v252 = vld [vmem:[%s215] sm:$0xff]
        %v253 = vld [vmem:[%s215 + $0x8] sm:$0xff]
        %v254 = vlaneseq
        %v255 = vand.u32 %v254, 127
        %v256 = vadd.s32 %v255, 128
        %vm257 = vcmp.lt.s32.totalorder %v255, 0
        %v258 = vsub.s32 0, %v255
        %v259 = vsel %vm257, %v258, %v255
        %v260 = vshrl.u32 %v259, 4
        %v261 = vand.u32 %v259, 15
        %v262 = vsub.s32 0, %v261
        %v263 = vsel %vm257, %v262, %v261
        %vm264 = vcmp.lt.s32.totalorder %v256, 0
        %v265 = vsub.s32 0, %v256
        %v266 = vsel %vm264, %v265, %v256
        %v267 = vshrl.u32 %v266, 4
        %v268 = vand.u32 %v266, 15
        %v269 = vsub.s32 0, %v268
        %v270 = vsel %vm264, %v269, %v268
        %vm271 = vcmp.ne.s32.totalorder %v263, 0
        %vm272 = vcmp.ne.s32.totalorder %v270, 0
        %vm273 = vcmp.lt.s32.totalorder %v263, 0
        %vm274 = vcmp.lt.s32.totalorder %v270, 0
        %vm275 = vmand %vm273, %vm271
        %vm276 = vmand %vm274, %vm272
        %v277 = vadd.s32 %v263, 16
        %v278 = vadd.s32 %v270, 16
        %v279 = vsel %vm275, %v277, %v263
        %v280 = vsel %vm276, %v278, %v270
        %vm281 = vcmp.eq.s32.totalorder %v279, 0
        %vm282 = vcmp.eq.s32.totalorder %v280, 0
        %vm283 = vcmp.eq.s32.totalorder %v279, 15
        %vm284 = vcmp.eq.s32.totalorder %v280, 15
        %v285 = vld [vmem:[#allocation5] sm:$0xff]
        %286 = vrot.lane.b32.xlu0 %v252, 15
        %v287 = vpop.permute.xlu0 %286
        %288 = vrot.lane.b32.xlu0 %v253, 15
        %v289 = vpop.permute.xlu0 %288
        %vm290 = vcmp.lt.s32.totalorder %v255, 15
        %v291 = vsel %vm290, %v287, %v289
        %v292 = vsel %vm290, %v289, %v287
        %293 = vrot.lane.b32.xlu0 %v252, 127
        %v294 = vpop.permute.xlu0 %293
        %295 = vrot.lane.b32.xlu0 %v253, 127
        %v296 = vpop.permute.xlu0 %295
        %vm297 = vcmp.lt.s32.totalorder %v255, 127
        %v298 = vsel %vm297, %v294, %v296
        %v299 = vsel %vm297, %v296, %v294
        %v300 = vsel %vm283, 1, 0
        %v301 = vsel %vm284, 1, 0
        %vm302 = vcmp.eq.s32.totalorder %v300, 1
        %vm303 = vcmp.eq.s32.totalorder %v301, 1
        %v304 = vsel %vm302, %v292, %v298
        %v305 = vsel %vm303, %v291, %v299
        %306 = vrot.lane.b32.xlu0 %v252, 113
        %v307 = vpop.permute.xlu0 %306
        %308 = vrot.lane.b32.xlu0 %v253, 113
        %v309 = vpop.permute.xlu0 %308
        %vm310 = vcmp.lt.s32.totalorder %v255, 113
        %v311 = vsel %vm310, %v307, %v309
        %v312 = vsel %vm310, %v309, %v307
        %313 = vrot.lane.b32.xlu0 %v252, 1
        %v314 = vpop.permute.xlu0 %313
        %315 = vrot.lane.b32.xlu0 %v253, 1
        %v316 = vpop.permute.xlu0 %315
        %vm317 = vcmp.lt.s32.totalorder %v255, 1
        %v318 = vsel %vm317, %v314, %v316
        %v319 = vsel %vm317, %v316, %v314
        %v320 = vsel %vm281, 1, 0
        %v321 = vsel %vm282, 1, 0
        %vm322 = vcmp.eq.s32.totalorder %v320, 1
        %vm323 = vcmp.eq.s32.totalorder %v321, 1
        %v324 = vsel %vm322, %v311, %v319
        %v325 = vsel %vm323, %v312, %v318
        %326 = vrot.lane.b32.xlu0 %v324, 16
        %v327 = vpop.permute.xlu0 %326
        %328 = vrot.lane.b32.xlu0 %v325, 16
        %v329 = vpop.permute.xlu0 %328
        %vm330 = vcmp.lt.s32.totalorder %v255, 16
        %v331 = vsel %vm330, %v327, %v329
        %v332 = vsel %vm330, %v329, %v327
        %333 = vrot.lane.b32.xlu0 %v252, 16
        %v334 = vpop.permute.xlu0 %333
        %335 = vrot.lane.b32.xlu0 %v253, 16
        %v336 = vpop.permute.xlu0 %335
        %v337 = vsel %vm330, %v334, %v336
        %v338 = vsel %vm330, %v336, %v334
        %339 = vrot.lane.b32.xlu0 %v304, 16
        %v340 = vpop.permute.xlu0 %339
        %341 = vrot.lane.b32.xlu0 %v305, 16
        %v342 = vpop.permute.xlu0 %341
        %v343 = vsel %vm330, %v340, %v342
        %v344 = vsel %vm330, %v342, %v340
        %345 = vrot.lane.b32.xlu0 %v324, 112
        %v346 = vpop.permute.xlu0 %345
        %347 = vrot.lane.b32.xlu0 %v325, 112
        %v348 = vpop.permute.xlu0 %347
        %vm349 = vcmp.lt.s32.totalorder %v255, 112
        %v350 = vsel %vm349, %v346, %v348
        %v351 = vsel %vm349, %v348, %v346
        %352 = vrot.lane.b32.xlu0 %v252, 112
        %v353 = vpop.permute.xlu0 %352
        %354 = vrot.lane.b32.xlu0 %v253, 112
        %v355 = vpop.permute.xlu0 %354
        %v356 = vsel %vm349, %v353, %v355
        %v357 = vsel %vm349, %v355, %v353
        %358 = vrot.lane.b32.xlu0 %v304, 112
        %v359 = vpop.permute.xlu0 %358
        %360 = vrot.lane.b32.xlu0 %v305, 112
        %v361 = vpop.permute.xlu0 %360
        %v362 = vsel %vm349, %v359, %v361
        %v363 = vsel %vm349, %v361, %v359
        %vm364 = vcmask 588800
        %v366 = vsel %vm364, %v285, 0
        %368 = vmatprep.subr.mxu0 0.0
        %369 = vmatpush1.msra.mxu0 0.0
        %370 = vmatprep.subr.mxu0 0.0
        %371 = vmatpush1.msra.mxu0 0.0
        %372 = vmatprep.subr.mxu0 0.0
        %373 = vmatpush1.msra.mxu0 0.0
        %374 = vmatprep.subr.mxu0 0.0
        %375 = vmatpush1.msra.mxu0 0.0
        %376 = vmatprep.subr.mxu0 0.0
        %377 = vmatpush1.msra.mxu0 0.0
        %378 = vmatprep.subr.mxu0 0.0
        %379 = vmatpush1.msra.mxu0 0.0
        %380 = vmatprep.subr.mxu0 0.0
        %381 = vmatpush1.msra.mxu0 0.0
        %382 = vmatprep.subr.mxu0 %v363
        %383 = vmatpush1.msra.mxu0 %v362
        %384 = vmatprep.subr.mxu0 %v357
        %385 = vmatpush1.msra.mxu0 %v356
        %386 = vmatprep.subr.mxu0 %v351
        %387 = vmatpush1.msra.mxu0 %v350
        %388 = vmatprep.subr.mxu0 %v305
        %389 = vmatpush1.msra.mxu0 %v304
        %390 = vmatprep.subr.mxu0 %v253
        %391 = vmatpush1.msra.mxu0 %v252
        %392 = vmatprep.subr.mxu0 %v325
        %393 = vmatpush1.msra.mxu0 %v324
        %394 = vmatprep.subr.mxu0 %v343
        %395 = vmatpush1.msra.mxu0 %v344
        %396 = vmatprep.subr.mxu0 %v337
        %397 = vmatpush1.msra.mxu0 %v338
        %398 = vmatprep.subr.mxu0 %v331
        %399 = vmatpush1.msra.mxu0 %v332
        %400 = vmatprep.subr.mxu0 0.0
        %401 = vmatpush2.msra.mxu0 0.0
        %402 = vmatprep.subr.mxu0 0.0
        %403 = vmatpush2.msra.mxu0 0.0
        %404 = vmatprep.subr.mxu0 0.0
        %405 = vmatpush2.msra.mxu0 0.0
        %406 = vmatprep.subr.mxu0 0.0
        %407 = vmatpush2.msra.mxu0 0.0
        %408 = vmatprep.subr.mxu0 0.0
        %409 = vmatpush2.msra.mxu0 0.0
        %410 = vmatprep.subr.mxu0 0.0
        %411 = vmatpush2.msra.mxu0 0.0
        %412 = vmatprep.subr.mxu0 0.0
        %413 = vmatpush2.msra.mxu0 0.0
        %414 = vmatprep.subr.mxu0 0.0
        %415 = vmatpush2.msra.mxu0 0.0
        %416 = vmatprep.subr.mxu0 0.0
        %417 = vmatpush2.msra.mxu0 0.0
        %418 = vmatprep.subr.mxu0 0.0
        %419 = vmatpush2.msra.mxu0 0.0
        %420 = vmatprep.subr.mxu0 0.0
        %421 = vmatpush2.msra.mxu0 0.0
        %422 = vmatprep.subr.mxu0 0.0
        %423 = vmatpush2.msra.mxu0 0.0
        %424 = vmatprep.subr.mxu0 0.0
        %425 = vmatpush2.msra.mxu0 0.0
        %426 = vmatprep.subr.mxu0 0.0
        %427 = vmatpush2.msra.mxu0 0.0
        %428 = vmatprep.subr.mxu0 0.0
        %429 = vmatpush2.msra.mxu0 0.0
        %430 = vmatprep.subr.mxu0 0.0
        %431 = vmatpush2.msra.mxu0 0.0
        %432 = vmatprep.mubr.f32.mxu0 0.0
        %433 = vmatmul.mubr.f32.gmra.mxu0 %v366
        %v434 = vpop.f32.mrf.mxu0
        %v435 = vadd.f32 0.0, %v434
        %v436 = vpop.f32.mrf.mxu0
        %v437 = vadd.f32 0.0, %v436
        %438 = vdwg.mxu0
        %v439 = vadd.f32 %v435, %v437
        %440 = vadd.xlane.f32.xlu0 %v439
        %v441 = vpop.xlane.xlu0 %440
        %v442 = vmul.f32 %v435, %v435
        %v443 = vmul.f32 %v437, %v437
        %v444 = vadd.f32 %v442, %v443
        %445 = vadd.xlane.f32.xlu0 %v444
        %v446 = vpop.xlane.xlu0 %445
        %v447 = vmul.f32 %v441, 0.00390625
        %v448 = vmul.f32 %v446, 0.00390625
        %v449 = vmul.f32 %v447, %v447
        %v450 = vsub.f32 %v448, %v449
        %v451 = vsub.f32 %v435, %v447
        %v452 = vsub.f32 %v437, %v447
        %v453 = vadd.f32 %v450, 1e-05
        %v454 = vrsqrt.pop %v453
        %v455 = vmul.f32 %v451, %v454
        %v456 = vmul.f32 %v452, %v454
        %v457 = vmul.f32 %v455, 0.01
        %v458 = vmul.f32 %v456, 0.01
        %v459 = vmax.f32 %v455, %v457
        %v460 = vmax.f32 %v456, %v458
        %v461 = vld [vmem:[#allocation7] sm:$0xff]
        %462 = vrot.lane.b32.xlu0 %v459, 15
        %v463 = vpop.permute.xlu0 %462
        %464 = vrot.lane.b32.xlu0 %v460, 15
        %v465 = vpop.permute.xlu0 %464
        %v466 = vsel %vm290, %v463, %v465
        %v467 = vsel %vm290, %v465, %v463
        %468 = vrot.lane.b32.xlu0 %v459, 127
        %v469 = vpop.permute.xlu0 %468
        %470 = vrot.lane.b32.xlu0 %v460, 127
        %v471 = vpop.permute.xlu0 %470
        %v472 = vsel %vm297, %v469, %v471
        %v473 = vsel %vm297, %v471, %v469
        %v474 = vsel %vm302, %v467, %v472
        %v475 = vsel %vm303, %v466, %v473
        %476 = vrot.lane.b32.xlu0 %v459, 113
        %v477 = vpop.permute.xlu0 %476
        %478 = vrot.lane.b32.xlu0 %v460, 113
        %v479 = vpop.permute.xlu0 %478
        %v480 = vsel %vm310, %v477, %v479
        %v481 = vsel %vm310, %v479, %v477
        %482 = vrot.lane.b32.xlu0 %v459, 1
        %v483 = vpop.permute.xlu0 %482
        %484 = vrot.lane.b32.xlu0 %v460, 1
        %v485 = vpop.permute.xlu0 %484
        %v486 = vsel %vm317, %v483, %v485
        %v487 = vsel %vm317, %v485, %v483
        %v488 = vsel %vm322, %v480, %v487
        %v489 = vsel %vm323, %v481, %v486
        %490 = vrot.lane.b32.xlu0 %v488, 16
        %v491 = vpop.permute.xlu0 %490
        %492 = vrot.lane.b32.xlu0 %v489, 16
        %v493 = vpop.permute.xlu0 %492
        %v494 = vsel %vm330, %v491, %v493
        %v495 = vsel %vm330, %v493, %v491
        %496 = vrot.lane.b32.xlu0 %v459, 16
        %v497 = vpop.permute.xlu0 %496
        %498 = vrot.lane.b32.xlu0 %v460, 16
        %v499 = vpop.permute.xlu0 %498
        %v500 = vsel %vm330, %v497, %v499
        %v501 = vsel %vm330, %v499, %v497
        %502 = vrot.lane.b32.xlu0 %v474, 16
        %v503 = vpop.permute.xlu0 %502
        %504 = vrot.lane.b32.xlu0 %v475, 16
        %v505 = vpop.permute.xlu0 %504
        %v506 = vsel %vm330, %v503, %v505
        %v507 = vsel %vm330, %v505, %v503
        %508 = vrot.lane.b32.xlu0 %v488, 112
        %v509 = vpop.permute.xlu0 %508
        %510 = vrot.lane.b32.xlu0 %v489, 112
        %v511 = vpop.permute.xlu0 %510
        %v512 = vsel %vm349, %v509, %v511
        %v513 = vsel %vm349, %v511, %v509
        %514 = vrot.lane.b32.xlu0 %v459, 112
        %v515 = vpop.permute.xlu0 %514
        %516 = vrot.lane.b32.xlu0 %v460, 112
        %v517 = vpop.permute.xlu0 %516
        %v518 = vsel %vm349, %v515, %v517
        %v519 = vsel %vm349, %v517, %v515
        %520 = vrot.lane.b32.xlu0 %v474, 112
        %v521 = vpop.permute.xlu0 %520
        %522 = vrot.lane.b32.xlu0 %v475, 112
        %v523 = vpop.permute.xlu0 %522
        %v524 = vsel %vm349, %v521, %v523
        %v525 = vsel %vm349, %v523, %v521
        %v527 = vsel %vm364, %v461, 0
        %529 = vmatprep.subr.mxu0 0.0
        %530 = vmatpush1.msra.mxu0 0.0
        %531 = vmatprep.subr.mxu0 0.0
        %532 = vmatpush1.msra.mxu0 0.0
        %533 = vmatprep.subr.mxu0 0.0
        %534 = vmatpush1.msra.mxu0 0.0
        %535 = vmatprep.subr.mxu0 0.0
        %536 = vmatpush1.msra.mxu0 0.0
        %537 = vmatprep.subr.mxu0 0.0
        %538 = vmatpush1.msra.mxu0 0.0
        %539 = vmatprep.subr.mxu0 0.0
        %540 = vmatpush1.msra.mxu0 0.0
        %541 = vmatprep.subr.mxu0 0.0
        %542 = vmatpush1.msra.mxu0 0.0
        %543 = vmatprep.subr.mxu0 %v525
        %544 = vmatpush1.msra.mxu0 %v524
        %545 = vmatprep.subr.mxu0 %v519
        %546 = vmatpush1.msra.mxu0 %v518
        %547 = vmatprep.subr.mxu0 %v513
        %548 = vmatpush1.msra.mxu0 %v512
        %549 = vmatprep.subr.mxu0 %v475
        %550 = vmatpush1.msra.mxu0 %v474
        %551 = vmatprep.subr.mxu0 %v460
        %552 = vmatpush1.msra.mxu0 %v459
        %553 = vmatprep.subr.mxu0 %v489
        %554 = vmatpush1.msra.mxu0 %v488
        %555 = vmatprep.subr.mxu0 %v506
        %556 = vmatpush1.msra.mxu0 %v507
        %557 = vmatprep.subr.mxu0 %v500
        %558 = vmatpush1.msra.mxu0 %v501
        %559 = vmatprep.subr.mxu0 %v494
        %560 = vmatpush1.msra.mxu0 %v495
        %561 = vmatprep.subr.mxu0 0.0
        %562 = vmatpush2.msra.mxu0 0.0
        %563 = vmatprep.subr.mxu0 0.0
        %564 = vmatpush2.msra.mxu0 0.0
        %565 = vmatprep.subr.mxu0 0.0
        %566 = vmatpush2.msra.mxu0 0.0
        %567 = vmatprep.subr.mxu0 0.0
        %568 = vmatpush2.msra.mxu0 0.0
        %569 = vmatprep.subr.mxu0 0.0
        %570 = vmatpush2.msra.mxu0 0.0
        %571 = vmatprep.subr.mxu0 0.0
        %572 = vmatpush2.msra.mxu0 0.0
        %573 = vmatprep.subr.mxu0 0.0
        %574 = vmatpush2.msra.mxu0 0.0
        %575 = vmatprep.subr.mxu0 0.0
        %576 = vmatpush2.msra.mxu0 0.0
        %577 = vmatprep.subr.mxu0 0.0
        %578 = vmatpush2.msra.mxu0 0.0
        %579 = vmatprep.subr.mxu0 0.0
        %580 = vmatpush2.msra.mxu0 0.0
        %581 = vmatprep.subr.mxu0 0.0
        %582 = vmatpush2.msra.mxu0 0.0
        %583 = vmatprep.subr.mxu0 0.0
        %584 = vmatpush2.msra.mxu0 0.0
        %585 = vmatprep.subr.mxu0 0.0
        %586 = vmatpush2.msra.mxu0 0.0
        %587 = vmatprep.subr.mxu0 0.0
        %588 = vmatpush2.msra.mxu0 0.0
        %589 = vmatprep.subr.mxu0 0.0
        %590 = vmatpush2.msra.mxu0 0.0
        %591 = vmatprep.subr.mxu0 0.0
        %592 = vmatpush2.msra.mxu0 0.0
        %593 = vmatprep.mubr.f32.mxu0 0.0
        %594 = vmatmul.mubr.f32.gmra.mxu0 %v527
        %v595 = vpop.f32.mrf.mxu0
        %v596 = vadd.f32 0.0, %v595
        %v597 = vpop.f32.mrf.mxu0
        %v598 = vadd.f32 0.0, %v597
        %599 = vdwg.mxu0
        %v600 = vadd.f32 %v596, %v598
        %601 = vadd.xlane.f32.xlu0 %v600
        %v602 = vpop.xlane.xlu0 %601
        %v603 = vmul.f32 %v596, %v596
        %v604 = vmul.f32 %v598, %v598
        %v605 = vadd.f32 %v603, %v604
        %606 = vadd.xlane.f32.xlu0 %v605
        %v607 = vpop.xlane.xlu0 %606
        %v608 = vmul.f32 %v602, 0.00390625
        %v609 = vmul.f32 %v607, 0.00390625
        %v610 = vmul.f32 %v608, %v608
        %v611 = vsub.f32 %v609, %v610
        %v612 = vsub.f32 %v596, %v608
        %v613 = vsub.f32 %v598, %v608
        %v614 = vadd.f32 %v611, 1e-05
        %v615 = vrsqrt.pop %v614
        %v616 = vmul.f32 %v612, %v615
        %v617 = vmul.f32 %v613, %v615
        %v618 = vmul.f32 %v616, 0.01
        %v619 = vmul.f32 %v617, 0.01
        %v620 = vmax.f32 %v616, %v618
        %v621 = vmax.f32 %v617, %v619
        %v622 = vld [vmem:[#allocation8] sm:$0xff]
        %vm623 = vcmask 64512
        %v625 = vsel %vm623, %v622, 0
        %627 = vmatprep.subr.mxu0 0.0
        %628 = vmatpush1.msra.mxu0 0.0
        %629 = vmatprep.subr.mxu0 0.0
        %630 = vmatpush1.msra.mxu0 0.0
        %631 = vmatprep.subr.mxu0 0.0
        %632 = vmatpush1.msra.mxu0 0.0
        %633 = vmatprep.subr.mxu0 0.0
        %634 = vmatpush1.msra.mxu0 0.0
        %635 = vmatprep.subr.mxu0 0.0
        %636 = vmatpush1.msra.mxu0 0.0
        %637 = vmatprep.subr.mxu0 0.0
        %638 = vmatpush1.msra.mxu0 0.0
        %639 = vmatprep.subr.mxu0 0.0
        %640 = vmatpush1.msra.mxu0 0.0
        %641 = vmatprep.subr.mxu0 0.0
        %642 = vmatpush1.msra.mxu0 0.0
        %643 = vmatprep.subr.mxu0 0.0
        %644 = vmatpush1.msra.mxu0 0.0
        %645 = vmatprep.subr.mxu0 0.0
        %646 = vmatpush1.msra.mxu0 0.0
        %647 = vmatprep.subr.mxu0 0.0
        %648 = vmatpush1.msra.mxu0 0.0
        %649 = vmatprep.subr.mxu0 0.0
        %650 = vmatpush1.msra.mxu0 0.0
        %651 = vmatprep.subr.mxu0 0.0
        %652 = vmatpush1.msra.mxu0 0.0
        %653 = vmatprep.subr.mxu0 0.0
        %654 = vmatpush1.msra.mxu0 0.0
        %655 = vmatprep.subr.mxu0 0.0
        %656 = vmatpush1.msra.mxu0 0.0
        %657 = vmatprep.subr.mxu0 %v621
        %658 = vmatpush1.msra.mxu0 %v620
        %659 = vmatprep.subr.mxu0 0.0
        %660 = vmatpush2.msra.mxu0 0.0
        %661 = vmatprep.subr.mxu0 0.0
        %662 = vmatpush2.msra.mxu0 0.0
        %663 = vmatprep.subr.mxu0 0.0
        %664 = vmatpush2.msra.mxu0 0.0
        %665 = vmatprep.subr.mxu0 0.0
        %666 = vmatpush2.msra.mxu0 0.0
        %667 = vmatprep.subr.mxu0 0.0
        %668 = vmatpush2.msra.mxu0 0.0
        %669 = vmatprep.subr.mxu0 0.0
        %670 = vmatpush2.msra.mxu0 0.0
        %671 = vmatprep.subr.mxu0 0.0
        %672 = vmatpush2.msra.mxu0 0.0
        %673 = vmatprep.subr.mxu0 0.0
        %674 = vmatpush2.msra.mxu0 0.0
        %675 = vmatprep.subr.mxu0 0.0
        %676 = vmatpush2.msra.mxu0 0.0
        %677 = vmatprep.subr.mxu0 0.0
        %678 = vmatpush2.msra.mxu0 0.0
        %679 = vmatprep.subr.mxu0 0.0
        %680 = vmatpush2.msra.mxu0 0.0
        %681 = vmatprep.subr.mxu0 0.0
        %682 = vmatpush2.msra.mxu0 0.0
        %683 = vmatprep.subr.mxu0 0.0
        %684 = vmatpush2.msra.mxu0 0.0
        %685 = vmatprep.subr.mxu0 0.0
        %686 = vmatpush2.msra.mxu0 0.0
        %687 = vmatprep.subr.mxu0 0.0
        %688 = vmatpush2.msra.mxu0 0.0
        %689 = vmatprep.subr.mxu0 0.0
        %690 = vmatpush2.msra.mxu0 0.0
        %691 = vmatprep.mubr.f32.mxu0 0.0
        %692 = vmatmul.mubr.f32.gmra.mxu0 %v625
        %v693 = vpop.f32.mrf.mxu0
        %v694 = vadd.f32 0.0, %v693
        %v695 = vpop.f32.mrf.mxu0
        %v696 = vadd.f32 0.0, %v695
        %697 = vdwg.mxu0
        %v698 = vadd.f32 %v694, %v696
        %699 = vadd.xlane.f32.xlu0 %v698
        %v700 = vpop.xlane.xlu0 %699
        %v701 = vmul.f32 %v694, %v694
        %v702 = vmul.f32 %v696, %v696
        %v703 = vadd.f32 %v701, %v702
        %704 = vadd.xlane.f32.xlu0 %v703
        %v705 = vpop.xlane.xlu0 %704
        %v706 = vmul.f32 %v700, 0.00390625
        %v707 = vmul.f32 %v705, 0.00390625
        %v708 = vmul.f32 %v706, %v706
        %v709 = vsub.f32 %v707, %v708
        %v710 = vsub.f32 %v694, %v706
        %v711 = vsub.f32 %v696, %v706
        %v712 = vadd.f32 %v709, 1e-05
        %v713 = vrsqrt.pop %v712
        %v714 = vmul.f32 %v710, %v713
        %v715 = vmul.f32 %v711, %v713
        %v716 = vmul.f32 %v714, 0.01
        %v717 = vmul.f32 %v715, 0.01
        %v718 = vmax.f32 %v714, %v716
        %v719 = vmax.f32 %v715, %v717
        %720 = vst [vmem:[%s251] sm:$0xff] %v718
        %721 = vst [vmem:[%s251 + $0x8] sm:$0xff] %v719
        %s722 = sand.u32 %s120, 1
        %s723 = scalar_lea.sflag [#allocation4], %s722
        %s724 = sand.u32 %s120, 1
        %s725 = smul.addr %s724, 16
        %s726 = scalar_lea.vmem [#allocation10], %s725
        // Predicated region
        $region53: #{tpu_custom_call.1} parent=35 // pred_check
          %p727 = pneg %p130
        $region54: #{tpu_custom_call.1} parent=35 // pred_check_branch
          %729 = sbr.rel (%p727) target = $region56
        $region55: #{tpu_custom_call.1} parent=35 // pred_region
          %s731 = ssub.s32 256, 256
          %732 = vsyncadd %s723, %s731
          %s733 = smul.addr %s23, 2
          %s734 = smul.addr %s733, 128
          %s735 = scalar_lea.hbm %s4, %s734
          %s737 = sshll.u32 %s726, 4
          %s738 = int_to_ptr.vmem [resolvable:$true] %s737
          %740 = dma.vmem_to_hbm [thread:$0]  %s738, 256, %s735, %s723
        $region56: #{tpu_custom_call.1} parent=35 // pred_fallthru
          _
      $region36: #{tpu_custom_call.1} parent=5 // pred_fallthru
        _
      %p741 = scmp.le.s32.totalorder 2, %s18
      // Predicated region
      $region57: #{tpu_custom_call.1} parent=5 // pred_check
        %p742 = pneg %p741
      $region58: #{tpu_custom_call.1} parent=5 // pred_check_branch
        %744 = sbr.rel (%p742) target = $region60
      $region59: #{tpu_custom_call.1} parent=5 // pred_region
        %s745 = ssub.s32 %s18, 2
        // Predicated region
        $region61: #{tpu_custom_call.1} parent=59 // pred_check
          %p746 = pneg %p136
        $region62: #{tpu_custom_call.1} parent=59 // pred_check_branch
          %748 = sbr.rel (%p746) target = $region64
        $region63: #{tpu_custom_call.1} parent=59 // pred_region
          %s749 = sand.u32 %s121, 1
          %s750 = scalar_lea.sflag [#allocation4], %s749
          %s751 = sand.u32 %s121, 1
          %s752 = smul.addr %s751, 16
          %s753 = scalar_lea.vmem [#allocation10], %s752
          %754 = dma.done %s750, 256
        $region64: #{tpu_custom_call.1} parent=59 // pred_fallthru
          _
      $region60: #{tpu_custom_call.1} parent=5 // pred_fallthru
        _
    $region6: #{tpu_custom_call.1} parent=1 // loop_footer
      %s22 = sadd.s32 1, %s18
    $region7: #{tpu_custom_call.1} parent=1 // loop_footer_branch
      %17 = sbr.rel target = $region3
    $region8: #{tpu_custom_call.1} parent=1 // loop_exit
      _
    %755 = vsyncpa [#allocation3], 1
    %s756 = scalar_lea.sflag [#allocation3], 1
    %757 = vsyncpa %s756, 1
    %758 = vsyncpa [#allocation6], 1
    %759 = vsyncpa [#allocation9], 1
    %760 = vsyncpa [#allocation4], 1
    %s761 = scalar_lea.sflag [#allocation4], 1
    %762 = vsyncpa %s761, 1

</llo_original>
